<compile_context>
chip_gen: v6e
topology: v6e:2x2x1
jax: 0.10.0
libtpu: 0.0.40
codegen_flags: <defaults>
</compile_context>

<pallas_src>
import functools

import jax
import jax.numpy as jnp
from jax import lax
from jax.experimental import pallas as pl
from jax.experimental.pallas import tpu as pltpu


def _distill_loss_kernel(x_ref, out_ref, dist_ref, lbl_ref, w_ref, b_ref,
                         loss_ref, *, alpha, tau, batch, num_classes, masked):
    """One batch tile per (parallel) grid step; writes a per-tile partial loss.

    x_ref    : (TB, D)       teacher inputs (tile)
    out_ref  : (TB, C)       student logits (tile)
    dist_ref : (TB, C)       student distillation logits (tile)
    lbl_ref  : (TB, 1)       int32 labels (tile)
    w_ref    : (D, C)        teacher weight * 1/tau, bf16 (resident)
    b_ref    : (1, C)        teacher bias   * 1/tau, f32  (resident)
    loss_ref : (1, 8, 128)   per-tile partial loss (all elements identical)
    """
    tb, c = out_ref.shape
    inv_t = 1.0 / tau

    # ---- base criterion: mean CE via per-row logsumexp(z) - z[label] --------
    z = out_ref[...].astype(jnp.float32)
    zmax = jnp.max(z, axis=1, keepdims=True)
    lse = jnp.log(jnp.sum(jnp.exp(z - zmax), axis=1, keepdims=True)) + zmax
    cols = lax.broadcasted_iota(jnp.int32, (tb, c), 1)
    z_lbl = jnp.sum(jnp.where(cols == lbl_ref[...], z, 0.0),
                    axis=1, keepdims=True)
    base_rows = lse - z_lbl                                        # (TB, 1)

    # ---- teacher forward: bf16 MXU dot, 1/tau already folded into W and b ---
    t = (jnp.dot(x_ref[...].astype(jnp.bfloat16), w_ref[...],
                 preferred_element_type=jnp.float32)
         + b_ref[...].astype(jnp.float32))
    tmax = jnp.max(t, axis=1, keepdims=True)
    ts = t - tmax
    e_t = jnp.exp(ts)                       # reused for log_softmax and KD sum
    s_t = jnp.sum(e_t, axis=1, keepdims=True)
    ls_t = ts - jnp.log(s_t)                # log_softmax(teacher / T)

    # ---- student distillation head: log_softmax(outputs_dist / T) -----------
    d = dist_ref[...].astype(jnp.float32)
    ds = (d - jnp.max(d, axis=1, keepdims=True)) * inv_t
    ls_s = ds - jnp.log(jnp.sum(jnp.exp(ds), axis=1, keepdims=True))

    # ---- KD at row granularity (no full-tile p_t, no full-tile mask) --------
    row_kd = jnp.sum(e_t * (ls_t - ls_s), axis=1, keepdims=True)   # (TB, 1)
    kd_rows = row_kd * pl.reciprocal(s_t, approx=False)            # (TB, 1)

    if masked:
        rows = pl.program_id(0) * tb + lax.broadcasted_iota(jnp.int32, (tb, 1), 0)
        m = (rows < batch).astype(jnp.float32)
        base_rows = base_rows * m
        kd_rows = kd_rows * m

    # Normalization and the alpha blend folded into per-tile constants; the
    # wrapper just sums the partials.
    base_scale = (1.0 - alpha) / batch
    kd_scale = alpha * tau * tau / (batch * num_classes)
    partial = (base_scale * jnp.sum(base_rows, keepdims=True)
               + kd_scale * jnp.sum(kd_rows, keepdims=True))       # (1, 1)
    loss_ref[...] = jnp.broadcast_to(partial.reshape(1, 1, 1), loss_ref.shape)


def distillation_loss(inputs, outputs, outputs_dist, labels, teacher_w,
                      teacher_b, *, alpha, tau, tile_b=512,
                      vmem_limit_bytes=48 * 1024 * 1024):
    B, C = outputs.shape
    D = inputs.shape[1]

    # --- batch tiling: prefer a tile that divides B; pad only as a fallback --
    if B <= tile_b:
        tb, nb, bp = B, 1, B                 # single tile == full batch dim
    else:
        tb = max(8, (min(tile_b, B) // 8) * 8)
        chosen = None
        for cand in range(tb, 7, -8):        # largest mult-of-8 divisor of B
            if B % cand == 0:
                chosen = cand
                break
        if chosen is not None:
            tb = chosen
        nb = (B + tb - 1) // tb
        bp = nb * tb
    masked = bp != B

    if masked:
        pad = bp - B
        inputs = jnp.pad(inputs, ((0, pad), (0, 0)))
        outputs = jnp.pad(outputs, ((0, pad), (0, 0)))
        outputs_dist = jnp.pad(outputs_dist, ((0, pad), (0, 0)))
        labels = jnp.pad(labels, ((0, pad),))
    lbl = labels.astype(jnp.int32).reshape(bp, 1)

    # One-time hoists (grid-invariant): fold 1/tau into W/b, W in bf16 for MXU.
    inv_t = 1.0 / float(tau)
    w_p = (teacher_w.astype(jnp.float32) * inv_t).astype(jnp.bfloat16)
    b_p = (teacher_b.astype(jnp.float32) * inv_t).reshape(1, C)

    kernel = functools.partial(
        _distill_loss_kernel, alpha=float(alpha), tau=float(tau),
        batch=B, num_classes=C, masked=masked)

    partials = pl.pallas_call(
        kernel,
        out_shape=jax.ShapeDtypeStruct((nb, 8, 128), jnp.float32),
        grid=(nb,),
        in_specs=[
            pl.BlockSpec((tb, D), lambda i: (i, 0)),    # teacher inputs (stream)
            pl.BlockSpec((tb, C), lambda i: (i, 0)),    # student logits (stream)
            pl.BlockSpec((tb, C), lambda i: (i, 0)),    # student dist logits
            pl.BlockSpec((tb, 1), lambda i: (i, 0)),    # labels
            pl.BlockSpec((D, C), lambda i: (0, 0)),     # teacher W (resident)
            pl.BlockSpec((1, C), lambda i: (0, 0)),     # teacher b (resident)
        ],
        out_specs=pl.BlockSpec((1, 8, 128), lambda i: (i, 0, 0)),
        compiler_params=pltpu.CompilerParams(
            dimension_semantics=("parallel",),
            vmem_limit_bytes=vmem_limit_bytes),
    )(inputs, outputs, outputs_dist, lbl, w_p, b_p)

    return jnp.sum(partials[:, 0, 0])


# ---------------------------- pure-JAX reference -----------------------------
def _reference(inputs, outputs, outputs_dist, labels, w, b, *, alpha, tau):
    t = inputs @ w + b
    logp = jax.nn.log_softmax(outputs, axis=1)
    base = -jnp.mean(logp[jnp.arange(outputs.shape[0]), labels])
    ls_s = jax.nn.log_softmax(outputs_dist / tau, axis=1)
    ls_t = jax.nn.log_softmax(t / tau, axis=1)
    kd = jnp.sum(jnp.exp(ls_t) * (ls_t - ls_s)) * (tau * tau) / outputs_dist.size
    return base * (1 - alpha) + kd * alpha


def _make_case(key, B, D, C):
    k_x, k_o, k_od, k_lbl, k_w, k_b = jax.random.split(key, 6)
    inputs = jax.random.normal(k_x, (B, D), dtype=jnp.float32)
    outputs = jax.random.normal(k_o, (B, C), dtype=jnp.float32)          # student head
    outputs_dist = jax.random.normal(k_od, (B, C), dtype=jnp.float32)    # distill head
    labels = jax.random.randint(k_lbl, (B,), 0, C, dtype=jnp.int32)
    teacher_w = jax.random.normal(k_w, (D, C), dtype=jnp.float32) * 0.1
    teacher_b = jax.random.normal(k_b, (C,), dtype=jnp.float32) * 0.01
    return inputs, outputs, outputs_dist, labels, teacher_w, teacher_b


if __name__ == "__main__":
    ALPHA, TAU = 0.5, 2.0
    D, C = 32, 120                      # class dim deliberately not 128-aligned
    key = jax.random.PRNGKey(0)
    k1, k2 = jax.random.split(key)

    # Case 1: B=24 with tile_b=8 -> tile divides B, multi-tile, zero padding.
    # Case 2: B=20 with tile_b=8 -> padded/masked fallback path (3 tiles of 8).
    ok = True
    for case_key, B, tb in ((k1, 24, 8), (k2, 20, 8)):
        (inputs, outputs, outputs_dist, labels,
         teacher_w, teacher_b) = _make_case(case_key, B, D, C)

        loss = distillation_loss(inputs, outputs, outputs_dist, labels,
                                 teacher_w, teacher_b, alpha=ALPHA, tau=TAU,
                                 tile_b=tb)
        loss = jax.block_until_ready(loss)

        ref = _reference(inputs, outputs, outputs_dist, labels, teacher_w,
                         teacher_b, alpha=ALPHA, tau=TAU)
        # tolerance covers the bf16 teacher matmul operands (f32 accumulation)
        ok = ok and bool(jnp.allclose(loss, ref, rtol=1e-3, atol=1e-3))
        assert ok, (B, loss, ref)

    print("KERNEL_OK")
</pallas_src>

<mosaic_0001>
module attributes {stable_mosaic.version = 11 : i64} {
  func.func @_distill_loss_kernel(%arg0: i32, %arg1: memref<8x32xf32, #tpu.memory_space<vmem>>, %arg2: memref<8x120xf32, #tpu.memory_space<vmem>>, %arg3: memref<8x120xf32, #tpu.memory_space<vmem>>, %arg4: memref<8x1xi32, #tpu.memory_space<vmem>>, %arg5: memref<32x120xbf16, #tpu.memory_space<vmem>>, %arg6: memref<1x120xf32, #tpu.memory_space<vmem>>, %arg7: memref<1x8x128xf32, #tpu.memory_space<vmem>>) attributes {dimension_semantics = [#tpu.dimension_semantics<parallel>], iteration_bounds = array<i64: 3>, scalar_prefetch = 0 : i64, scratch_operands = 0 : i64, tpu.core_type = #tpu.core_type<tc>, window_params = [{transform_indices = @transform_0, window_bounds = array<i64: 8, 32>}, {transform_indices = @transform_1, window_bounds = array<i64: 8, 120>}, {transform_indices = @transform_2, window_bounds = array<i64: 8, 120>}, {transform_indices = @transform_3, window_bounds = array<i64: 8, 1>}, {pipeline_mode = #tpu.pipeline_mode<synchronous>, transform_indices = @transform_4, window_bounds = array<i64: 32, 120>}, {pipeline_mode = #tpu.pipeline_mode<synchronous>, transform_indices = @transform_5, window_bounds = array<i64: 1, 120>}, {transform_indices = @transform_6, window_bounds = array<i64: 1, 8, 128>}]} {
    %c0 = arith.constant 0 : index
    %c0_0 = arith.constant 0 : index
    %0 = vector.load %arg2[%c0, %c0_0] : memref<8x120xf32, #tpu.memory_space<vmem>>, vector<8x120xf32>
    %cst = arith.constant dense<0xFF800000> : vector<8xf32>
    %1 = vector.multi_reduction <maximumf>, %0, %cst [1] : vector<8x120xf32> to vector<8xf32>
    %2 = vector.shape_cast %1 : vector<8xf32> to vector<8x1xf32>
    %3 = vector.broadcast %2 : vector<8x1xf32> to vector<8x120xf32>
    %4 = arith.subf %0, %3 : vector<8x120xf32>
    %5 = math.exp %4 : vector<8x120xf32>
    %cst_1 = arith.constant dense<0.000000e+00> : vector<8xf32>
    %6 = vector.multi_reduction <add>, %5, %cst_1 [1] : vector<8x120xf32> to vector<8xf32>
    %7 = vector.shape_cast %6 : vector<8xf32> to vector<8x1xf32>
    %8 = math.log %7 : vector<8x1xf32>
    %9 = arith.addf %8, %2 : vector<8x1xf32>
    %10 = tpu.iota {dimensions = array<i32: 1>} : vector<8x120xi32>
    %c0_2 = arith.constant 0 : index
    %c0_3 = arith.constant 0 : index
    %11 = vector.load %arg4[%c0_2, %c0_3] : memref<8x1xi32, #tpu.memory_space<vmem>>, vector<8x1xi32>
    %12 = vector.broadcast %11 : vector<8x1xi32> to vector<8x120xi32>
    %13 = arith.cmpi eq, %10, %12 : vector<8x120xi32>
    %cst_4 = arith.constant 0.000000e+00 : f32
    %14 = vector.broadcast %cst_4 : f32 to vector<8x120xf32>
    %15 = arith.select %13, %0, %14 : vector<8x120xi1>, vector<8x120xf32>
    %cst_5 = arith.constant dense<0.000000e+00> : vector<8xf32>
    %16 = vector.multi_reduction <add>, %15, %cst_5 [1] : vector<8x120xf32> to vector<8xf32>
    %17 = vector.shape_cast %16 : vector<8xf32> to vector<8x1xf32>
    %18 = arith.subf %9, %17 : vector<8x1xf32>
    %c0_6 = arith.constant 0 : index
    %c0_7 = arith.constant 0 : index
    %19 = vector.load %arg1[%c0_6, %c0_7] : memref<8x32xf32, #tpu.memory_space<vmem>>, vector<8x32xf32>
    %20 = arith.truncf %19 : vector<8x32xf32> to vector<8x32xbf16>
    %c0_8 = arith.constant 0 : index
    %c0_9 = arith.constant 0 : index
    %21 = vector.load %arg5[%c0_8, %c0_9] : memref<32x120xbf16, #tpu.memory_space<vmem>>, vector<32x120xbf16>
    %cst_10 = arith.constant dense<0.000000e+00> : vector<8x120xf32>
    %22 = tpu.matmul %20, %21, %cst_10 {dimension_numbers = #tpu.dot_dimension_numbers<[1], [0], [0], [1], [0, 0, 1, 1], [], []>} : vector<8x32xbf16>, vector<32x120xbf16>, vector<8x120xf32> -> vector<8x120xf32>
    %c0_11 = arith.constant 0 : index
    %c0_12 = arith.constant 0 : index
    %23 = vector.load %arg6[%c0_11, %c0_12] : memref<1x120xf32, #tpu.memory_space<vmem>>, vector<1x120xf32>
    %24 = vector.broadcast %23 : vector<1x120xf32> to vector<8x120xf32>
    %25 = arith.addf %22, %24 : vector<8x120xf32>
    %cst_13 = arith.constant dense<0xFF800000> : vector<8xf32>
    %26 = vector.multi_reduction <maximumf>, %25, %cst_13 [1] : vector<8x120xf32> to vector<8xf32>
    %27 = vector.shape_cast %26 : vector<8xf32> to vector<8x1xf32>
    %28 = vector.broadcast %27 : vector<8x1xf32> to vector<8x120xf32>
    %29 = arith.subf %25, %28 : vector<8x120xf32>
    %30 = math.exp %29 : vector<8x120xf32>
    %cst_14 = arith.constant dense<0.000000e+00> : vector<8xf32>
    %31 = vector.multi_reduction <add>, %30, %cst_14 [1] : vector<8x120xf32> to vector<8xf32>
    %32 = vector.shape_cast %31 : vector<8xf32> to vector<8x1xf32>
    %33 = math.log %32 : vector<8x1xf32>
    %34 = vector.broadcast %33 : vector<8x1xf32> to vector<8x120xf32>
    %35 = arith.subf %29, %34 : vector<8x120xf32>
    %c0_15 = arith.constant 0 : index
    %c0_16 = arith.constant 0 : index
    %36 = vector.load %arg3[%c0_15, %c0_16] : memref<8x120xf32, #tpu.memory_space<vmem>>, vector<8x120xf32>
    %cst_17 = arith.constant dense<0xFF800000> : vector<8xf32>
    %37 = vector.multi_reduction <maximumf>, %36, %cst_17 [1] : vector<8x120xf32> to vector<8xf32>
    %38 = vector.shape_cast %37 : vector<8xf32> to vector<8x1xf32>
    %39 = vector.broadcast %38 : vector<8x1xf32> to vector<8x120xf32>
    %40 = arith.subf %36, %39 : vector<8x120xf32>
    %cst_18 = arith.constant 5.000000e-01 : f32
    %41 = vector.broadcast %cst_18 : f32 to vector<8x120xf32>
    %42 = arith.mulf %40, %41 : vector<8x120xf32>
    %43 = math.exp %42 : vector<8x120xf32>
    %cst_19 = arith.constant dense<0.000000e+00> : vector<8xf32>
    %44 = vector.multi_reduction <add>, %43, %cst_19 [1] : vector<8x120xf32> to vector<8xf32>
    %45 = vector.shape_cast %44 : vector<8xf32> to vector<8x1xf32>
    %46 = math.log %45 : vector<8x1xf32>
    %47 = vector.broadcast %46 : vector<8x1xf32> to vector<8x120xf32>
    %48 = arith.subf %42, %47 : vector<8x120xf32>
    %49 = arith.subf %35, %48 : vector<8x120xf32>
    %50 = arith.mulf %30, %49 : vector<8x120xf32>
    %cst_20 = arith.constant dense<0.000000e+00> : vector<8xf32>
    %51 = vector.multi_reduction <add>, %50, %cst_20 [1] : vector<8x120xf32> to vector<8xf32>
    %52 = vector.shape_cast %51 : vector<8xf32> to vector<8x1xf32>
    %53 = tpu.reciprocal %32 : vector<8x1xf32> -> vector<8x1xf32>
    %54 = arith.mulf %52, %53 : vector<8x1xf32>
    %55 = vector.shape_cast %18 : vector<8x1xf32> to vector<1x8x1xf32>
    %cst_21 = arith.constant dense<0.000000e+00> : vector<1xf32>
    %56 = vector.multi_reduction <add>, %55, %cst_21 [1, 2] : vector<1x8x1xf32> to vector<1xf32>
    %57 = vector.shape_cast %56 : vector<1xf32> to vector<1x1x1xf32>
    %58 = vector.extract %57[0, 0, 0] : f32 from vector<1x1x1xf32>
    %59 = vector.broadcast %58 : f32 to vector<1x1xf32>
    %cst_22 = arith.constant 0.020833334 : f32
    %60 = vector.broadcast %cst_22 : f32 to vector<1x1xf32>
    %61 = arith.mulf %60, %59 : vector<1x1xf32>
    %62 = vector.shape_cast %54 : vector<8x1xf32> to vector<1x8x1xf32>
    %cst_23 = arith.constant dense<0.000000e+00> : vector<1xf32>
    %63 = vector.multi_reduction <add>, %62, %cst_23 [1, 2] : vector<1x8x1xf32> to vector<1xf32>
    %64 = vector.shape_cast %63 : vector<1xf32> to vector<1x1x1xf32>
    %65 = vector.extract %64[0, 0, 0] : f32 from vector<1x1x1xf32>
    %66 = vector.broadcast %65 : f32 to vector<1x1xf32>
    %cst_24 = arith.constant 6.94444461E-4 : f32
    %67 = vector.broadcast %cst_24 : f32 to vector<1x1xf32>
    %68 = arith.mulf %67, %66 : vector<1x1xf32>
    %69 = arith.addf %61, %68 : vector<1x1xf32>
    %70 = vector.shape_cast %69 : vector<1x1xf32> to vector<1x1x1xf32>
    %71 = vector.shape_cast %70 : vector<1x1x1xf32> to vector<1x1x1xf32>
    %72 = vector.broadcast %71 : vector<1x1x1xf32> to vector<1x8x128xf32>
    %c0_25 = arith.constant 0 : index
    %c0_26 = arith.constant 0 : index
    %c0_27 = arith.constant 0 : index
    %73 = vector.load %arg7[%c0_25, %c0_26, %c0_27] : memref<1x8x128xf32, #tpu.memory_space<vmem>>, vector<1x8x128xf32>
    tpu.vector_store %arg7[%c0_25, %c0_26, %c0_27], %72 {strides = array<i32>} : memref<1x8x128xf32, #tpu.memory_space<vmem>>, vector<1x8x128xf32>,
    return
  }
  func.func @transform_0(%arg0: i32) -> (i32, i32) {
    %c0_i32 = arith.constant 0 : i32
    %c0_i32_0 = arith.constant 0 : i32
    return %arg0, %c0_i32 : i32, i32
  }
  func.func @transform_1(%arg0: i32) -> (i32, i32) {
    %c0_i32 = arith.constant 0 : i32
    %c0_i32_0 = arith.constant 0 : i32
    return %arg0, %c0_i32 : i32, i32
  }
  func.func @transform_2(%arg0: i32) -> (i32, i32) {
    %c0_i32 = arith.constant 0 : i32
    %c0_i32_0 = arith.constant 0 : i32
    return %arg0, %c0_i32 : i32, i32
  }
  func.func @transform_3(%arg0: i32) -> (i32, i32) {
    %c0_i32 = arith.constant 0 : i32
    %c0_i32_0 = arith.constant 0 : i32
    return %arg0, %c0_i32 : i32, i32
  }
  func.func @transform_4(%arg0: i32) -> (i32, i32) {
    %c0_i32 = arith.constant 0 : i32
    %c0_i32_0 = arith.constant 0 : i32
    %c0_i32_1 = arith.constant 0 : i32
    return %c0_i32, %c0_i32_0 : i32, i32
  }
  func.func @transform_5(%arg0: i32) -> (i32, i32) {
    %c0_i32 = arith.constant 0 : i32
    %c0_i32_0 = arith.constant 0 : i32
    %c0_i32_1 = arith.constant 0 : i32
    return %c0_i32, %c0_i32_0 : i32, i32
  }
  func.func @transform_6(%arg0: i32) -> (i32, i32, i32) {
    %c0_i32 = arith.constant 0 : i32
    %c0_i32_0 = arith.constant 0 : i32
    %c0_i32_1 = arith.constant 0 : i32
    return %arg0, %c0_i32, %c0_i32_0 : i32, i32, i32
  }
}

</mosaic_0001>

<llo_original>
// kernel: tpu_custom_call.1
$region0: #{tpu_custom_call.1}
  #allocation0 [shape = 'u32[]', space=smem, size = 0x4, offset = 0x4, fixed_abs, tag = 'smem constant byte address 0x4 - core index']
  #allocation1 [shape = 'u32[144,128]{1,0:T(1,128)}', space=vmem, size = 0x12000, scoped, tag = 'internal scratch']
  %s0 = inlined_call_operand.vmem [shape: f32[24,32], index: 0, kind: input, shape index: {}]
  %s1 = inlined_call_operand.hbm [shape: f32[24,120], index: 1, kind: input, shape index: {}]
  %s2 = inlined_call_operand.hbm [shape: f32[24,120], index: 2, kind: input, shape index: {}]
  %s3 = inlined_call_operand.vmem [shape: s32[24,1], index: 3, kind: input, shape index: {}]
  %s4 = inlined_call_operand.hbm [shape: bf16[32,120], index: 4, kind: input, shape index: {}]
  %s5 = inlined_call_operand.vmem [shape: f32[1,120], index: 5, kind: input, shape index: {}]
  %s6 = inlined_call_operand.hbm [shape: f32[3,8,128], index: 6, kind: output, shape index: {}]
  %s7 = sld [smem:[#allocation0]]
  $region69: #{tpu_custom_call.1} parent=0
    _
  %s9 = ssub.s32 1, %s7
  %s10 = scalar_select 0, %s9, %s7
  $region1: #{tpu_custom_call.1} parent=0
    #allocation2 [shape = 'u8[8192]{0}', space=vmem, size = 0x2000, scoped, tag = 'input window, operand 1']
    #allocation3 [shape = 's32[2]{0}', space=sflag, size = 0x8, scoped, tag = 'scoped memory for tpu_custom_call.1']
    #allocation4 [shape = 's32[2]{0}', space=sflag, size = 0x8, scoped, tag = 'scoped memory for tpu_custom_call.1']
    #allocation5 [shape = 'u8[8192]{0}', space=vmem, size = 0x2000, scoped, tag = 'input window, operand 2']
    #allocation6 [shape = 's32[2]{0}', space=sflag, size = 0x8, scoped, tag = 'scoped memory for tpu_custom_call.1']
    #allocation7 [shape = 'u8[8192]{0}', space=vmem, size = 0x2000, scoped, tag = 'input window, operand 4, single buffered']
    #allocation8 [shape = 'u8[8192]{0}', space=vmem, size = 0x2000, scoped, tag = 'output window, operand 0']
    %11 = vsyncpa [#allocation3], 0
    %s12 = scalar_lea.sflag [#allocation3], 1
    %13 = vsyncpa %s12, 0
    %14 = vsyncpa [#allocation6], 0
    %s15 = scalar_lea.sflag [#allocation6], 1
    %16 = vsyncpa %s15, 0
    %17 = vsyncpa [#allocation4], 0
    %s18 = scalar_lea.sflag [#allocation4], 1
    %19 = vsyncpa %s18, 0
    loop: start=0, step=1, limit=5
    $region2: #{tpu_custom_call.1} parent=1 // loop_pre_header
      _
    $region3: #{tpu_custom_call.1} parent=1 // loop_header
      %s21 = sphi 0, %s25
      %p22 = scmp.ge.s32.totalorder %s21, 5
      %s31 = sphi 0, %s33
      %s34 = sphi 0, %s31
      %s35 = sphi 0, %s34
      %s51 = sphi 0, %s35
      %s57 = sphi 0, %s59
      %s60 = sphi 0, %s57
      %s61 = sphi 0, %s60
      %s77 = sphi 0, %s61
      %s83 = sphi 0, %s85
      %s86 = sphi 0, %s83
      %s87 = sphi 0, %s86
      %s103 = sphi 0, %s87
      %s109 = sphi 0, %s111
      %s112 = sphi 0, %s109
      %s113 = sphi 0, %s112
      %s129 = sphi 0, %s113
      %s133 = sphi 0, %s133
      %s135 = sphi 0, %s133
      %s136 = sphi 0, %s135
      %s150 = sphi 0, %s136
      %s154 = sphi 0, %s154
      %s156 = sphi 0, %s154
      %s157 = sphi 0, %s156
      %s171 = sphi 0, %s157
      %s177 = sphi 0, %s179
      %s180 = sphi 0, %s177
      %s181 = sphi 0, %s180
      %s197 = sphi 0, %s181
    $region4: #{tpu_custom_call.1} parent=1 // loop_header_branch
      %24 = sbr.rel (%p22) target = $region8
    $region5: #{tpu_custom_call.1} parent=1 // loop_body
      %s26 = ssub.s32 %s21, 1
      %s27 = ssub.s32 %s21, 2
      %s28 = sadd.s32 %s21, 1
      %s29 = ssub.s32 %s21, %s28
      %p30 = scmp.eq.s32.totalorder %s29, 0
      %s32 = sadd.s32 %s31, 1
      %s33 = scalar_select %p30, %s31, %s32
      %p36 = pneg %p30
      %p37 = scmp.eq.s32.totalorder %s21, 2
      %p38 = por %p36, %p37
      %p39 = scmp.ne.s32.totalorder %s31, %s34
      %p40 = scmp.eq.s32.totalorder %s21, 0
      %p41 = por %p39, %p40
      %p42 = scmp.ne.s32.totalorder %s31, %s34
      %p43 = scmp.eq.s32.totalorder %s26, 2
      %p44 = por %p42, %p43
      %p45 = scmp.ne.s32.totalorder %s34, %s35
      %p46 = scmp.eq.s32.totalorder %s26, 0
      %p47 = por %p45, %p46
      %p48 = scmp.ne.s32.totalorder %s34, %s35
      %p49 = scmp.eq.s32.totalorder %s27, 2
      %p50 = por %p48, %p49
      %p52 = scmp.ne.s32.totalorder %s35, %s51
      %p53 = scmp.eq.s32.totalorder %s27, 0
      %p54 = por %p52, %p53
      %s55 = ssub.s32 %s21, %s28
      %p56 = scmp.eq.s32.totalorder %s55, 0
      %s58 = sadd.s32 %s57, 1
      %s59 = scalar_select %p56, %s57, %s58
      %p62 = pneg %p56
      %p63 = scmp.eq.s32.totalorder %s21, 2
      %p64 = por %p62, %p63
      %p65 = scmp.ne.s32.totalorder %s57, %s60
      %p66 = scmp.eq.s32.totalorder %s21, 0
      %p67 = por %p65, %p66
      %p68 = scmp.ne.s32.totalorder %s57, %s60
      %p69 = scmp.eq.s32.totalorder %s26, 2
      %p70 = por %p68, %p69
      %p71 = scmp.ne.s32.totalorder %s60, %s61
      %p72 = scmp.eq.s32.totalorder %s26, 0
      %p73 = por %p71, %p72
      %p74 = scmp.ne.s32.totalorder %s60, %s61
      %p75 = scmp.eq.s32.totalorder %s27, 2
      %p76 = por %p74, %p75
      %p78 = scmp.ne.s32.totalorder %s61, %s77
      %p79 = scmp.eq.s32.totalorder %s27, 0
      %p80 = por %p78, %p79
      %s81 = ssub.s32 %s21, %s28
      %p82 = scmp.eq.s32.totalorder %s81, 0
      %s84 = sadd.s32 %s83, 1
      %s85 = scalar_select %p82, %s83, %s84
      %p88 = pneg %p82
      %p89 = scmp.eq.s32.totalorder %s21, 2
      %p90 = por %p88, %p89
      %p91 = scmp.ne.s32.totalorder %s83, %s86
      %p92 = scmp.eq.s32.totalorder %s21, 0
      %p93 = por %p91, %p92
      %p94 = scmp.ne.s32.totalorder %s83, %s86
      %p95 = scmp.eq.s32.totalorder %s26, 2
      %p96 = por %p94, %p95
      %p97 = scmp.ne.s32.totalorder %s86, %s87
      %p98 = scmp.eq.s32.totalorder %s26, 0
      %p99 = por %p97, %p98
      %p100 = scmp.ne.s32.totalorder %s86, %s87
      %p101 = scmp.eq.s32.totalorder %s27, 2
      %p102 = por %p100, %p101
      %p104 = scmp.ne.s32.totalorder %s87, %s103
      %p105 = scmp.eq.s32.totalorder %s27, 0
      %p106 = por %p104, %p105
      %s107 = ssub.s32 %s21, %s28
      %p108 = scmp.eq.s32.totalorder %s107, 0
      %s110 = sadd.s32 %s109, 1
      %s111 = scalar_select %p108, %s109, %s110
      %p114 = pneg %p108
      %p115 = scmp.eq.s32.totalorder %s21, 2
      %p116 = por %p114, %p115
      %p117 = scmp.ne.s32.totalorder %s109, %s112
      %p118 = scmp.eq.s32.totalorder %s21, 0
      %p119 = por %p117, %p118
      %p120 = scmp.ne.s32.totalorder %s109, %s112
      %p121 = scmp.eq.s32.totalorder %s26, 2
      %p122 = por %p120, %p121
      %p123 = scmp.ne.s32.totalorder %s112, %s113
      %p124 = scmp.eq.s32.totalorder %s26, 0
      %p125 = por %p123, %p124
      %p126 = scmp.ne.s32.totalorder %s112, %s113
      %p127 = scmp.eq.s32.totalorder %s27, 2
      %p128 = por %p126, %p127
      %p130 = scmp.ne.s32.totalorder %s113, %s129
      %p131 = scmp.eq.s32.totalorder %s27, 0
      %p132 = por %p130, %p131
      %s134 = sadd.s32 %s133, 1
      %p137 = scmp.eq.s32.totalorder %s21, 2
      %p138 = scmp.ne.s32.totalorder %s133, %s135
      %p139 = scmp.eq.s32.totalorder %s21, 0
      %p140 = por %p138, %p139
      %p141 = scmp.ne.s32.totalorder %s133, %s135
      %p142 = scmp.eq.s32.totalorder %s26, 2
      %p143 = por %p141, %p142
      %p144 = scmp.ne.s32.totalorder %s135, %s136
      %p145 = scmp.eq.s32.totalorder %s26, 0
      %p146 = por %p144, %p145
      %p147 = scmp.ne.s32.totalorder %s135, %s136
      %p148 = scmp.eq.s32.totalorder %s27, 2
      %p149 = por %p147, %p148
      %p151 = scmp.ne.s32.totalorder %s136, %s150
      %p152 = scmp.eq.s32.totalorder %s27, 0
      %p153 = por %p151, %p152
      %s155 = sadd.s32 %s154, 1
      %p158 = scmp.eq.s32.totalorder %s21, 2
      %p159 = scmp.ne.s32.totalorder %s154, %s156
      %p160 = scmp.eq.s32.totalorder %s21, 0
      %p161 = por %p159, %p160
      %p162 = scmp.ne.s32.totalorder %s154, %s156
      %p163 = scmp.eq.s32.totalorder %s26, 2
      %p164 = por %p162, %p163
      %p165 = scmp.ne.s32.totalorder %s156, %s157
      %p166 = scmp.eq.s32.totalorder %s26, 0
      %p167 = por %p165, %p166
      %p168 = scmp.ne.s32.totalorder %s156, %s157
      %p169 = scmp.eq.s32.totalorder %s27, 2
      %p170 = por %p168, %p169
      %p172 = scmp.ne.s32.totalorder %s157, %s171
      %p173 = scmp.eq.s32.totalorder %s27, 0
      %p174 = por %p172, %p173
      %s175 = ssub.s32 %s21, %s28
      %p176 = scmp.eq.s32.totalorder %s175, 0
      %s178 = sadd.s32 %s177, 1
      %s179 = scalar_select %p176, %s177, %s178
      %p182 = pneg %p176
      %p183 = scmp.eq.s32.totalorder %s21, 2
      %p184 = por %p182, %p183
      %p185 = scmp.ne.s32.totalorder %s177, %s180
      %p186 = scmp.eq.s32.totalorder %s21, 0
      %p187 = por %p185, %p186
      %p188 = scmp.ne.s32.totalorder %s177, %s180
      %p189 = scmp.eq.s32.totalorder %s26, 2
      %p190 = por %p188, %p189
      %p191 = scmp.ne.s32.totalorder %s180, %s181
      %p192 = scmp.eq.s32.totalorder %s26, 0
      %p193 = por %p191, %p192
      %p194 = scmp.ne.s32.totalorder %s180, %s181
      %p195 = scmp.eq.s32.totalorder %s27, 2
      %p196 = por %p194, %p195
      %p198 = scmp.ne.s32.totalorder %s181, %s197
      %p199 = scmp.eq.s32.totalorder %s27, 0
      %p200 = por %p198, %p199
      %p201 = scmp.le.s32.totalorder 1, %s21
      %p202 = scmp.lt.s32.totalorder %s21, 4
      %p203 = pnand %p201, %p202
      %p204 = pneg %p203
      // Predicated region
      $region9: #{tpu_custom_call.1} parent=5 // pred_check
        _
      $region10: #{tpu_custom_call.1} parent=5 // pred_check_branch
        %206 = sbr.rel (%p203) target = $region12
      $region11: #{tpu_custom_call.1} parent=5 // pred_region
        %s207 = ssub.s32 %s21, 1
        // Predicated region
        $region13: #{tpu_custom_call.1} parent=11 // pred_check
          %p208 = pneg %p146
        $region14: #{tpu_custom_call.1} parent=11 // pred_check_branch
          %210 = sbr.rel (%p208) target = $region16
        $region15: #{tpu_custom_call.1} parent=11 // pred_region
          %s212 = ssub.s32 256, 256
          %213 = vsyncadd [#allocation6], %s212
          %s214 = sshll.u32 [#allocation7], 4
          %s215 = int_to_ptr.vmem [resolvable:$true] %s214
          %220 = dma.hbm_to_vmem [thread:$0]  %s4, 256, %s215, [#allocation6], 64, 64, 4
        $region16: #{tpu_custom_call.1} parent=11 // pred_fallthru
          _
        // Predicated region
        $region17: #{tpu_custom_call.1} parent=11 // pred_check
          %p221 = pneg %p167
        $region18: #{tpu_custom_call.1} parent=11 // pred_check_branch
          %223 = sbr.rel (%p221) target = $region20
        $region19: #{tpu_custom_call.1} parent=11 // pred_region
          _
        $region20: #{tpu_custom_call.1} parent=11 // pred_fallthru
          _
      $region12: #{tpu_custom_call.1} parent=5 // pred_fallthru
        _
      %p224 = scmp.lt.s32.totalorder %s21, 3
      // Predicated region
      $region21: #{tpu_custom_call.1} parent=5 // pred_check
        %p225 = pneg %p224
      $region22: #{tpu_custom_call.1} parent=5 // pred_check_branch
        %227 = sbr.rel (%p225) target = $region24
      $region23: #{tpu_custom_call.1} parent=5 // pred_region
        // Predicated region
        $region25: #{tpu_custom_call.1} parent=23 // pred_check
          %p228 = pneg %p41
        $region26: #{tpu_custom_call.1} parent=23 // pred_check_branch
          %230 = sbr.rel (%p228) target = $region28
        $region27: #{tpu_custom_call.1} parent=23 // pred_region
          %p231 = scmp.lt.s32.totalorder %s21, 2
          %s232 = scalar_select %p231, %s21, 2
          %s233 = smul.addr %s232, 8
          %s234 = scalar_lea.vmem %s0, %s233
        $region28: #{tpu_custom_call.1} parent=23 // pred_fallthru
          _
        // Predicated region
        $region29: #{tpu_custom_call.1} parent=23 // pred_check
          %p235 = pneg %p67
        $region30: #{tpu_custom_call.1} parent=23 // pred_check_branch
          %237 = sbr.rel (%p235) target = $region32
        $region31: #{tpu_custom_call.1} parent=23 // pred_region
          %s238 = sand.u32 %s57, 1
          %s239 = scalar_lea.sflag [#allocation3], %s238
          %s240 = sand.u32 %s57, 1
          %s241 = smul.addr %s240, 8
          %s242 = scalar_lea.vmem [#allocation2], %s241
          %s244 = ssub.s32 128, 128
          %245 = vsyncadd %s239, %s244
          %s246 = smul.addr %s21, 128
          %s247 = scalar_lea.hbm %s1, %s246
          %s249 = sshll.u32 %s242, 4
          %s250 = int_to_ptr.vmem [resolvable:$true] %s249
          %252 = dma.hbm_to_vmem [thread:$0]  %s247, 128, %s250, %s239
        $region32: #{tpu_custom_call.1} parent=23 // pred_fallthru
          _
        // Predicated region
        $region33: #{tpu_custom_call.1} parent=23 // pred_check
          %p253 = pneg %p93
        $region34: #{tpu_custom_call.1} parent=23 // pred_check_branch
          %255 = sbr.rel (%p253) target = $region36
        $region35: #{tpu_custom_call.1} parent=23 // pred_region
          %s256 = sand.u32 %s21, 1
          %s257 = scalar_lea.sflag [#allocation6], %s256
          %s258 = sand.u32 %s83, 1
          %s259 = smul.addr %s258, 8
          %s260 = scalar_lea.vmem [#allocation5], %s259
          %s262 = ssub.s32 128, 128
          %263 = vsyncadd %s257, %s262
          %s264 = smul.addr %s21, 128
          %s265 = scalar_lea.hbm %s2, %s264
          %s267 = sshll.u32 %s260, 4
          %s268 = int_to_ptr.vmem [resolvable:$true] %s267
          %270 = dma.hbm_to_vmem [thread:$0]  %s265, 128, %s268, %s257
        $region36: #{tpu_custom_call.1} parent=23 // pred_fallthru
          _
        // Predicated region
        $region37: #{tpu_custom_call.1} parent=23 // pred_check
          %p271 = pneg %p119
        $region38: #{tpu_custom_call.1} parent=23 // pred_check_branch
          %273 = sbr.rel (%p271) target = $region40
        $region39: #{tpu_custom_call.1} parent=23 // pred_region
          %p274 = scmp.lt.s32.totalorder %s21, 2
          %s275 = scalar_select %p274, %s21, 2
          %s276 = smul.addr %s275, 8
          %s277 = scalar_lea.vmem %s3, %s276
        $region40: #{tpu_custom_call.1} parent=23 // pred_fallthru
          _
      $region24: #{tpu_custom_call.1} parent=5 // pred_fallthru
        _
      %p278 = scmp.le.s32.totalorder 1, %s21
      %p279 = scmp.lt.s32.totalorder %s21, 4
      %p280 = pnand %p278, %p279
      %p281 = pneg %p280
      // Predicated region
      $region41: #{tpu_custom_call.1} parent=5 // pred_check
        _
      $region42: #{tpu_custom_call.1} parent=5 // pred_check_branch
        %283 = sbr.rel (%p280) target = $region44
      $region43: #{tpu_custom_call.1} parent=5 // pred_region
        %s284 = ssub.s32 %s21, 1
        %s285 = sand.u32 %s60, 1
        %s286 = scalar_lea.sflag [#allocation3], %s285
        %s287 = sand.u32 %s60, 1
        %s288 = smul.addr %s287, 8
        %s289 = scalar_lea.vmem [#allocation2], %s288
        // Predicated region
        $region45: #{tpu_custom_call.1} parent=43 // pred_check
          %p290 = pneg %p73
        $region46: #{tpu_custom_call.1} parent=43 // pred_check_branch
          %292 = sbr.rel (%p290) target = $region48
        $region47: #{tpu_custom_call.1} parent=43 // pred_region
          %293 = dma.done %s286, 128
        $region48: #{tpu_custom_call.1} parent=43 // pred_fallthru
          _
        %s294 = sand.u32 %s26, 1
        %s295 = scalar_lea.sflag [#allocation6], %s294
        %s296 = sand.u32 %s86, 1
        %s297 = smul.addr %s296, 8
        %s298 = scalar_lea.vmem [#allocation5], %s297
        // Predicated region
        $region49: #{tpu_custom_call.1} parent=43 // pred_check
          %p299 = pneg %p99
        $region50: #{tpu_custom_call.1} parent=43 // pred_check_branch
          %301 = sbr.rel (%p299) target = $region52
        $region51: #{tpu_custom_call.1} parent=43 // pred_region
          %302 = dma.done %s295, 128
        $region52: #{tpu_custom_call.1} parent=43 // pred_fallthru
          _
        // Predicated region
        $region53: #{tpu_custom_call.1} parent=43 // pred_check
          %p303 = pneg %p146
        $region54: #{tpu_custom_call.1} parent=43 // pred_check_branch
          %305 = sbr.rel (%p303) target = $region56
        $region55: #{tpu_custom_call.1} parent=43 // pred_region
          %306 = dma.done [#allocation6], 256
        $region56: #{tpu_custom_call.1} parent=43 // pred_fallthru
          _
        %p307 = scmp.lt.s32.totalorder %s26, 2
        %s308 = scalar_select %p307, %s26, 2
        %s309 = smul.addr %s308, 8
        %s310 = scalar_lea.vmem %s0, %s309
        %p311 = pneg %p47
        %p312 = pneg %p44
        %s313 = sand.u32 %s60, 1
        %s314 = scalar_lea.sflag [#allocation3], %s313
        %s315 = sand.u32 %s60, 1
        %s316 = smul.addr %s315, 8
        %s317 = scalar_lea.vmem [#allocation2], %s316
        %p318 = pneg %p73
        %p319 = pneg %p70
        %s320 = sand.u32 %s26, 1
        %s321 = scalar_lea.sflag [#allocation6], %s320
        %s322 = sand.u32 %s86, 1
        %s323 = smul.addr %s322, 8
        %s324 = scalar_lea.vmem [#allocation5], %s323
        %p325 = pneg %p99
        %p326 = pneg %p96
        %p327 = scmp.lt.s32.totalorder %s26, 2
        %s328 = scalar_select %p327, %s26, 2
        %s329 = smul.addr %s328, 8
        %s330 = scalar_lea.vmem %s3, %s329
        %p331 = pneg %p125
        %p332 = pneg %p122
        %p333 = pneg %p146
        %p334 = pneg %p143
        %p335 = pneg %p167
        %p336 = pneg %p164
        %p337 = pneg %p193
        %p338 = pneg %p190
        %s339 = sand.u32 %s180, 1
        %s340 = scalar_lea.sflag [#allocation4], %s339
        %s341 = sand.u32 %s180, 1
        %s342 = smul.addr %s341, 8
        %s343 = scalar_lea.vmem [#allocation8], %s342
        %p344 = scmp.lt.s32.totalorder %s26, 2
        %s345 = scalar_select %p344, %s26, 2
        %s346 = smul.addr %s345, 8
        %s347 = scalar_lea.vmem %s0, %s346
        %p348 = scmp.lt.s32.totalorder %s26, 2
        %s349 = scalar_select %p348, %s26, 2
        %s350 = smul.addr %s349, 8
        %s351 = scalar_lea.vmem %s3, %s350
        %v353 = vld [vmem:[%s289] sm:$0xff]
        %vm354 = vcmask 982016
        %v355 = vsel %vm354, %v353, -inf
        %356 = vmax.xlane.f32.xlu0 %v355
        %v357 = vpop.xlane.xlu0 %356
        %v358 = vsub.f32 %v353, %v357
        %v359 = vmul.f32 %v358, 1.442695
        %v360 = vpow.pop %v359
        %v361 = vsel %vm354, %v360, 0.0
        %362 = vadd.xlane.f32.xlu0 %v361
        %v363 = vpop.xlane.xlu0 %362
        %v364 = vlog2.pop %v363
        %v365 = vmul.f32 %v364, 0.6931472
        %v366 = vadd.f32 %v365, %v357
        %v367 = vlaneseq
        %v368 = vand.u32 %v367, 127
        %v369 = vld [vmem:[%s351] sm:$0xff]
        %370 = vset.pattern.permute.xlu0 0
        %371 = vperm.xlu0 %370, %v369
        %v372 = vpop.permute.xlu0 %371
        %vm373 = vcmp.eq.s32.totalorder %v368, %v372
        %v374 = vsel %vm373, %v353, 0.0
        %v375 = vsel %vm354, %v374, 0.0
        %376 = vadd.xlane.f32.xlu0 %v375
        %v377 = vpop.xlane.xlu0 %376
        %v378 = vsub.f32 %v366, %v377
        %v379 = vld [vmem:[%s347] sm:$0xff]
        %v380 = vpack.c.bf16 %v379, %v379
        %v381 = vld [vmem:[#allocation7] sm:$0xf]
        %v382 = vld [vmem:[#allocation7 + $0x4] sm:$0xf]
        %v383 = vld [vmem:[#allocation7 + $0x8] sm:$0xf]
        %v384 = vld [vmem:[#allocation7 + $0xc] sm:$0xf]
        %v385 = vld [vmem:[%s5] sm:$0x1]
        %v387 = vlaneseq
        %v388 = vshrl.u32 %v387, 7
        %v389 = vsub.s32 0, %v388
        %v390 = vrot.slane %v385, %v389
        %v396 = vunpack.c.l.b16 %v381
        %v397 = vunpack.c.l.b16 %v382
        %v398 = vunpack.c.l.b16 %v383
        %v399 = vunpack.c.l.b16 %v384
        %v400 = vpack.c.b16 %v397, %v396
        %v401 = vpack.c.b16 %v399, %v398
        %vm404 = vcmask 261120
        %v406 = vsel %vm404, %v380, 0
        %408 = vmatprep.subr.bf16.mxu0 0
        %409 = vmatpush1.bf16.msra.mxu0 0
        %410 = vmatprep.subr.bf16.mxu0 0
        %411 = vmatpush1.bf16.msra.mxu0 0
        %412 = vmatprep.subr.bf16.mxu0 0
        %413 = vmatpush1.bf16.msra.mxu0 0
        %414 = vmatprep.subr.bf16.mxu0 0
        %415 = vmatpush1.bf16.msra.mxu0 0
        %416 = vmatprep.subr.bf16.mxu0 0
        %417 = vmatpush1.bf16.msra.mxu0 0
        %418 = vmatprep.subr.bf16.mxu0 0
        %419 = vmatpush1.bf16.msra.mxu0 0
        %420 = vmatprep.subr.bf16.mxu0 0
        %421 = vmatpush1.bf16.msra.mxu0 %v401
        %422 = vmatprep.subr.bf16.mxu0 0
        %423 = vmatpush1.bf16.msra.mxu0 %v400
        %424 = vmatprep.subr.bf16.mxu0 0
        %425 = vmatpush2.bf16.msra.mxu0 0
        %426 = vmatprep.subr.bf16.mxu0 0
        %427 = vmatpush2.bf16.msra.mxu0 0
        %428 = vmatprep.subr.bf16.mxu0 0
        %429 = vmatpush2.bf16.msra.mxu0 0
        %430 = vmatprep.subr.bf16.mxu0 0
        %431 = vmatpush2.bf16.msra.mxu0 0
        %432 = vmatprep.subr.bf16.mxu0 0
        %433 = vmatpush2.bf16.msra.mxu0 0
        %434 = vmatprep.subr.bf16.mxu0 0
        %435 = vmatpush2.bf16.msra.mxu0 0
        %436 = vmatprep.subr.bf16.mxu0 0
        %437 = vmatpush2.bf16.msra.mxu0 0
        %438 = vmatprep.subr.bf16.mxu0 0
        %439 = vmatpush2.bf16.msra.mxu0 0
        %440 = vmatprep.mubr.bf16.mxu0 0
        %441 = vmatmul.mubr.bf16.gmra.mxu0 %v406
        %v442 = vpop.f32.mrf.mxu0
        %v443 = vadd.f32 %v390, %v442
        %v444 = vpop.f32.mrf.mxu0
        %v445 = vpop.f32.mrf.mxu0
        %v446 = vpop.f32.mrf.mxu0
        %447 = vdwg.mxu0
        %v448 = vsel %vm354, %v443, -inf
        %449 = vmax.xlane.f32.xlu0 %v448
        %v450 = vpop.xlane.xlu0 %449
        %v451 = vsub.f32 %v443, %v450
        %v452 = vmul.f32 %v451, 1.442695
        %v453 = vpow.pop %v452
        %v454 = vsel %vm354, %v453, 0.0
        %455 = vadd.xlane.f32.xlu0 %v454
        %v456 = vpop.xlane.xlu0 %455
        %v457 = vlog2.pop %v456
        %v458 = vmul.f32 %v457, 0.6931472
        %v459 = vsub.f32 %v451, %v458
        %v460 = vld [vmem:[%s298] sm:$0xff]
        %v461 = vsel %vm354, %v460, -inf
        %462 = vmax.xlane.f32.xlu0 %v461
        %v463 = vpop.xlane.xlu0 %462
        %v464 = vsub.f32 %v460, %v463
        %v465 = vmul.f32 %v464, 0.5
        %v466 = vmul.f32 %v465, 1.442695
        %v467 = vpow.pop %v466
        %v468 = vsel %vm354, %v467, 0.0
        %469 = vadd.xlane.f32.xlu0 %v468
        %v470 = vpop.xlane.xlu0 %469
        %v471 = vlog2.pop %v470
        %v472 = vmul.f32 %v471, 0.6931472
        %v473 = vsub.f32 %v465, %v472
        %v474 = vsub.f32 %v459, %v473
        %v475 = vmul.f32 %v453, %v474
        %v476 = vsel %vm354, %v475, 0.0
        %477 = vadd.xlane.f32.xlu0 %v476
        %v478 = vpop.xlane.xlu0 %477
        %v479 = vrcp.pop %v456
        %v480 = vmul.f32 %v478, %v479
        %vm481 = vcmask 7168
        %v482 = vsel %vm481, %v378, 0.0
        %483 = vadd.xlane.f32.xlu0 %v482
        %v484 = vpop.xlane.xlu0 %483
        %v485 = vrot.slane %v484, 4
        %v486 = vadd.f32 %v484, %v485
        %v487 = vrot.slane %v486, 2
        %v488 = vadd.f32 %v486, %v487
        %v489 = vrot.slane %v488, 1
        %v490 = vadd.f32 %v488, %v489
        %s491 = vtos %v490
        %v492 = vstv %s491
        %v493 = vmul.f32 %v492, 0.020833334
        %v494 = vsel %vm481, %v480, 0.0
        %495 = vadd.xlane.f32.xlu0 %v494
        %v496 = vpop.xlane.xlu0 %495
        %v497 = vrot.slane %v496, 4
        %v498 = vadd.f32 %v496, %v497
        %v499 = vrot.slane %v498, 2
        %v500 = vadd.f32 %v498, %v499
        %v501 = vrot.slane %v500, 1
        %v502 = vadd.f32 %v500, %v501
        %s503 = vtos %v502
        %v504 = vstv %s503
        %v505 = vmul.f32 %v504, 0.00069444446
        %v506 = vadd.f32 %v493, %v505
        %507 = vst [vmem:[%s343] sm:$0xff] %v506
        %s508 = sand.u32 %s180, 1
        %s509 = scalar_lea.sflag [#allocation4], %s508
        %s510 = sand.u32 %s180, 1
        %s511 = smul.addr %s510, 8
        %s512 = scalar_lea.vmem [#allocation8], %s511
        // Predicated region
        $region57: #{tpu_custom_call.1} parent=43 // pred_check
          %p513 = pneg %p190
        $region58: #{tpu_custom_call.1} parent=43 // pred_check_branch
          %515 = sbr.rel (%p513) target = $region60
        $region59: #{tpu_custom_call.1} parent=43 // pred_region
          %s517 = ssub.s32 128, 128
          %518 = vsyncadd %s509, %s517
          %s519 = smul.addr %s26, 128
          %s520 = scalar_lea.hbm %s6, %s519
          %s522 = sshll.u32 %s512, 4
          %s523 = int_to_ptr.vmem [resolvable:$true] %s522
          %525 = dma.vmem_to_hbm [thread:$0]  %s523, 128, %s520, %s509
        $region60: #{tpu_custom_call.1} parent=43 // pred_fallthru
          _
      $region44: #{tpu_custom_call.1} parent=5 // pred_fallthru
        _
      %p526 = scmp.le.s32.totalorder 2, %s21
      // Predicated region
      $region61: #{tpu_custom_call.1} parent=5 // pred_check
        %p527 = pneg %p526
      $region62: #{tpu_custom_call.1} parent=5 // pred_check_branch
        %529 = sbr.rel (%p527) target = $region64
      $region63: #{tpu_custom_call.1} parent=5 // pred_region
        %s530 = ssub.s32 %s21, 2
        // Predicated region
        $region65: #{tpu_custom_call.1} parent=63 // pred_check
          %p531 = pneg %p196
        $region66: #{tpu_custom_call.1} parent=63 // pred_check_branch
          %533 = sbr.rel (%p531) target = $region68
        $region67: #{tpu_custom_call.1} parent=63 // pred_region
          %s534 = sand.u32 %s181, 1
          %s535 = scalar_lea.sflag [#allocation4], %s534
          %s536 = sand.u32 %s181, 1
          %s537 = smul.addr %s536, 8
          %s538 = scalar_lea.vmem [#allocation8], %s537
          %539 = dma.done %s535, 128
        $region68: #{tpu_custom_call.1} parent=63 // pred_fallthru
          _
      $region64: #{tpu_custom_call.1} parent=5 // pred_fallthru
        _
    $region6: #{tpu_custom_call.1} parent=1 // loop_footer
      %s25 = sadd.s32 1, %s21
    $region7: #{tpu_custom_call.1} parent=1 // loop_footer_branch
      %20 = sbr.rel target = $region3
    $region8: #{tpu_custom_call.1} parent=1 // loop_exit
      _
    %540 = vsyncpa [#allocation3], 1
    %s541 = scalar_lea.sflag [#allocation3], 1
    %542 = vsyncpa %s541, 1
    %543 = vsyncpa [#allocation6], 1
    %s544 = scalar_lea.sflag [#allocation6], 1
    %545 = vsyncpa %s544, 1
    %546 = vsyncpa [#allocation4], 1
    %s547 = scalar_lea.sflag [#allocation4], 1
    %548 = vsyncpa %s547, 1

</llo_original>
